<compile_context>
chip_gen: v5e
topology: v5e:2x2
jax: 0.10.0
libtpu: 0.0.40
codegen_flags: <defaults>
</compile_context>

<pallas_src>
import functools

import jax
import jax.numpy as jnp
from jax import lax
from jax.experimental import pallas as pl
from jax.experimental.pallas import tpu as pltpu


def _mha_kernel(q_ref, k_ref, v_ref,
                wq_ref, wk_ref, wv_ref, wu_ref, bu_ref,
                o_ref,
                acc_ref, kproj_ref, vproj_ref,
                *, heads_per_group, head_dim, compute_dtype, approx_recip):
    """Grid = (batch, q_tiles, head_groups); head_groups is the accumulation axis.

    q_ref:  (1, tq, E)           k_ref/v_ref: (1, Sk, E)   (already compute_dtype)
    wq/wk/wv_ref: (1, E, G*D)    per-group projection weights, (in, out) layout
    wu_ref: (1, G*D, E)          per-group slice of unifyHeads weight, (in, out)
    bu_ref: (1, E)               unifyHeads bias (f32)
    o_ref:  (1, tq, E)
    acc_ref:   (tq, E) f32 scratch accumulator (persists over head groups)
    kproj_ref/vproj_ref: (n_head_groups, Sk, G*D) cached K/V projections
                         (persist over q-tiles within a batch).
    """
    qi = pl.program_id(1)
    hg = pl.program_id(2)
    G, D = heads_per_group, head_dim

    # ---- Fill the K/V projection cache once per (batch, head-group): only at
    # the first q-tile.  Reused for every subsequent q-tile of this batch.
    @pl.when(qi == 0)
    def _():
        k = k_ref[0]                                                  # (Sk, E)
        v = v_ref[0]                                                  # (Sk, E)
        kp = jnp.dot(k, wk_ref[0],
                     preferred_element_type=jnp.float32).astype(compute_dtype)
        vp = jnp.dot(v, wv_ref[0],
                     preferred_element_type=jnp.float32).astype(compute_dtype)
        kproj_ref[pl.ds(hg, 1)] = kp[None]                            # (1, Sk, G*D)
        vproj_ref[pl.ds(hg, 1)] = vp[None]

    @pl.when(hg == 0)
    def _():
        acc_ref[...] = jnp.zeros_like(acc_ref)

    # Per-group Q projection (pure MXU matmul, no in-kernel transpose).
    Qg = jnp.dot(q_ref[0], wq_ref[0],
                 preferred_element_type=jnp.float32).astype(compute_dtype)  # (tq, G*D)
    Kg = kproj_ref[hg]                                                      # (Sk, G*D)
    Vg = vproj_ref[hg]                                                      # (Sk, G*D)

    # Per-head attention within the group (static unroll; G is compile-time).
    head_outs = []
    for g in range(G):
        sl = slice(g * D, (g + 1) * D)
        Qh = Qg[:, sl]                                                # (tq, D)
        Kh = Kg[:, sl]                                                # (Sk, D)
        Vh = Vg[:, sl]                                                # (Sk, D)
        # scores = Qh @ Kh.T without an explicit transpose (contract last dims).
        scores = lax.dot_general(
            Qh, Kh, (((1,), (1,)), ((), ())),
            preferred_element_type=jnp.float32)                      # (tq, Sk) f32
        # Softmax in f32 over the UN-scaled scores (reference quirk preserved).
        m = jnp.max(scores, axis=-1, keepdims=True)
        e = jnp.exp(scores - m)
        denom = jnp.sum(e, axis=-1, keepdims=True)
        w = (e * pl.reciprocal(denom, approx=approx_recip)).astype(compute_dtype)
        head_outs.append(
            jnp.dot(w, Vh, preferred_element_type=jnp.float32).astype(compute_dtype))
    head_cat = head_outs[0] if G == 1 else jnp.concatenate(head_outs, axis=-1)

    # unifyHeads folded as a per-group accumulation: out += head_cat @ Wu_g.
    acc_ref[...] += jnp.dot(head_cat, wu_ref[0],
                            preferred_element_type=jnp.float32)      # (tq, E)

    @pl.when(hg == pl.num_programs(2) - 1)
    def _():
        o_ref[0] = (acc_ref[...] + bu_ref[...].astype(jnp.float32)).astype(o_ref.dtype)


def _pick_block_q(sq, cap=256):
    # Prefer MXU-friendly q-tiles; capped at 256 so scores/accumulator tiles
    # stay inside v7x's 64 MiB VMEM even at long Sk.
    for t in (256, 128, 64, 32, 16, 8):
        if t <= cap and sq % t == 0:
            return t
    return sq  # full extent is always a legal block dim


def _pick_head_group(n_heads, head_dim, target_lanes=128):
    # Smallest divisor g of n_heads with g*head_dim >= target_lanes (lane-dense
    # per-group blocks); fall back to all heads in one group.
    for g in range(1, n_heads + 1):
        if n_heads % g == 0 and g * head_dim >= target_lanes:
            return g
    return n_heads


def multi_head_attention(Q, K, V, params, *, n_heads, mask=None,
                         compute_dtype=jnp.float32, block_q=None,
                         heads_per_group=None, vmem_limit_bytes=None):
    """Q: (B, Sq, E); K, V: (B, Sk, E). Returns (B, Sq, E).

    compute_dtype=jnp.bfloat16 is recommended on v6e/v7x (f32 accumulation and
    f32 softmax are kept); default f32 reproduces the PyTorch module exactly.
    """
    assert mask is None, "TODO(synk): decoder mask not implemented"
    B, Sq, E = Q.shape
    _, Sk, _ = K.shape
    assert E % n_heads == 0, "embedding size must be divisible by n_heads"
    D = E // n_heads

    wq, wk, wv, wu, bu = params

    G = heads_per_group if heads_per_group is not None else _pick_head_group(n_heads, D)
    assert n_heads % G == 0
    n_hg = n_heads // G
    GD = G * D

    # All layout / dtype work done once in the wrapper (never inside the kernel):
    #   - pre-transpose nn.Linear weights to (in, out),
    #   - split per head-group into lane-dense (E, G*D) / (G*D, E) tiles,
    #   - cast inputs/weights to compute_dtype ONCE (halves DMA bytes in bf16).
    def split_proj(w):                       # (E_out, E_in) -> (n_hg, E_in, G*D)
        return jnp.transpose(w.T.reshape(E, n_hg, GD), (1, 0, 2))

    wq_g = split_proj(wq).astype(compute_dtype)
    wk_g = split_proj(wk).astype(compute_dtype)
    wv_g = split_proj(wv).astype(compute_dtype)
    wu_g = wu.T.reshape(n_hg, GD, E).astype(compute_dtype)
    bu2 = bu.reshape(1, E).astype(jnp.float32)

    Qc = Q.astype(compute_dtype)
    Kc = K.astype(compute_dtype)
    Vc = V.astype(compute_dtype)

    tq = block_q if block_q is not None else _pick_block_q(Sq)
    assert Sq % tq == 0
    n_qt = Sq // tq

    # Explicit VMEM budget from the actual tile footprint (default scoped VMEM
    # is only 16/32 MiB and would otherwise throttle pipelining at large Sk/E).
    cd_bytes = jnp.dtype(compute_dtype).itemsize
    out_bytes = jnp.dtype(Q.dtype).itemsize
    est = (2 * tq * E * cd_bytes                 # Q block (double-buffered)
           + 2 * 2 * Sk * E * cd_bytes           # K, V blocks (double-buffered)
           + 2 * 3 * E * GD * cd_bytes           # Wq/Wk/Wv blocks
           + 2 * GD * E * cd_bytes               # Wu block
           + 2 * E * 4                           # bias
           + 2 * tq * E * out_bytes              # output block
           + tq * E * 4                          # accumulator scratch
           + 2 * n_hg * Sk * GD * cd_bytes       # cached K/V projections
           + 3 * tq * Sk * 4)                    # scores / exp intermediates
    if vmem_limit_bytes is None:
        vmem_limit_bytes = min(max(int(est * 1.5) + (2 << 20), 32 << 20), 100 << 20)

    kernel = functools.partial(
        _mha_kernel,
        heads_per_group=G, head_dim=D,
        compute_dtype=compute_dtype,
        approx_recip=(compute_dtype == jnp.bfloat16))

    return pl.pallas_call(
        kernel,
        out_shape=jax.ShapeDtypeStruct((B, Sq, E), Q.dtype),
        grid_spec=pltpu.PrefetchScalarGridSpec(
            num_scalar_prefetch=0,
            grid=(B, n_qt, n_hg),
            in_specs=[
                pl.BlockSpec((1, tq, E), lambda b, qi, hg: (b, qi, 0)),   # Q
                pl.BlockSpec((1, Sk, E), lambda b, qi, hg: (b, 0, 0)),    # K
                pl.BlockSpec((1, Sk, E), lambda b, qi, hg: (b, 0, 0)),    # V
                pl.BlockSpec((1, E, GD), lambda b, qi, hg: (hg, 0, 0)),   # Wq[group]
                pl.BlockSpec((1, E, GD), lambda b, qi, hg: (hg, 0, 0)),   # Wk[group]
                pl.BlockSpec((1, E, GD), lambda b, qi, hg: (hg, 0, 0)),   # Wv[group]
                pl.BlockSpec((1, GD, E), lambda b, qi, hg: (hg, 0, 0)),   # Wu[group]
                pl.BlockSpec((1, E), lambda b, qi, hg: (0, 0)),           # bias
            ],
            out_specs=pl.BlockSpec((1, tq, E), lambda b, qi, hg: (b, qi, 0)),
            scratch_shapes=[
                pltpu.VMEM((tq, E), jnp.float32),              # group accumulator
                pltpu.VMEM((n_hg, Sk, GD), compute_dtype),     # cached K projection
                pltpu.VMEM((n_hg, Sk, GD), compute_dtype),     # cached V projection
            ],
        ),
        # q-tile axis is "arbitrary" because the K/V-projection cache is carried
        # across q-tiles; batch stays "parallel" for megacore sharding.
        compiler_params=pltpu.CompilerParams(
            dimension_semantics=("parallel", "arbitrary", "arbitrary"),
            vmem_limit_bytes=vmem_limit_bytes),
    )(Qc, Kc, Vc, wq_g, wk_g, wv_g, wu_g, bu2)


def reference_mha(Q, K, V, params, *, n_heads):
    """Pure-JAX reference mirroring the PyTorch forward exactly."""
    wq, wk, wv, wu, bu = params
    B, Sq, E = Q.shape
    _, Sk, _ = K.shape
    D = E // n_heads

    def chunk(x, S):
        x = x.reshape(B, S, n_heads, D).transpose(0, 2, 1, 3)
        return x.reshape(B * n_heads, S, D)

    Qp = chunk(Q @ wq.T, Sq)
    Kp = chunk(K @ wk.T, Sk)
    Vp = chunk(V @ wv.T, Sk)
    scores = jnp.einsum('bqd,bkd->bqk', Qp, Kp)
    w = jax.nn.softmax(scores, axis=-1)          # NB: un-scaled, like the ref.
    vals = jnp.einsum('bqk,bkd->bqd', w, Vp)
    vals = vals.reshape(B, n_heads, Sq, D).transpose(0, 2, 1, 3).reshape(B, Sq, E)
    return vals @ wu.T + bu


if __name__ == "__main__":
    key = jax.random.PRNGKey(0)
    ks = jax.random.split(key, 8)

    # --- Test 1: small shapes consistent with the module, exact f32 path. ---
    B, Sq, Sk, E, H = 2, 8, 8, 32, 4
    scale = 1.0 / jnp.sqrt(E)
    wq = jax.random.normal(ks[0], (E, E), jnp.float32) * scale
    wk = jax.random.normal(ks[1], (E, E), jnp.float32) * scale
    wv = jax.random.normal(ks[2], (E, E), jnp.float32) * scale
    wu = jax.random.normal(ks[3], (E, E), jnp.float32) * scale
    bu = jax.random.normal(ks[4], (E,), jnp.float32) * 0.01
    params = (wq, wk, wv, wu, bu)

    Q = jax.random.normal(ks[5], (B, Sq, E), jnp.float32)
    K = jax.random.normal(ks[6], (B, Sk, E), jnp.float32)
    V = jax.random.normal(ks[7], (B, Sk, E), jnp.float32)

    ref = reference_mha(Q, K, V, params, n_heads=H)
    out = jax.block_until_ready(multi_head_attention(Q, K, V, params, n_heads=H))
    assert out.shape == (B, Sq, E)
    assert jnp.allclose(out, ref, atol=1e-5, rtol=1e-5)

    # bf16-MXU path (f32 accumulation + f32 softmax): perf mode, looser check.
    out_bf16 = jax.block_until_ready(
        multi_head_attention(Q, K, V, params, n_heads=H,
                             compute_dtype=jnp.bfloat16))
    assert jnp.allclose(out_bf16, ref, atol=1e-1, rtol=1e-1)

    # --- Test 2: exercise q-tiling (K/V-projection cache reuse for qi > 0)
    #             and multiple head groups (group accumulation axis). ---
    Sq2 = 16
    Q2 = jax.random.normal(jax.random.PRNGKey(1), (B, Sq2, E), jnp.float32)
    ref2 = reference_mha(Q2, K, V, params, n_heads=H)
    out2 = jax.block_until_ready(
        multi_head_attention(Q2, K, V, params, n_heads=H,
                             block_q=8, heads_per_group=2))
    assert out2.shape == (B, Sq2, E)
    assert jnp.allclose(out2, ref2, atol=1e-5, rtol=1e-5)

    print("KERNEL_OK")
</pallas_src>

<mosaic_0001>
module attributes {stable_mosaic.version = 11 : i64} {
  func.func @_mha_kernel(%arg0: i32, %arg1: i32, %arg2: i32, %arg3: memref<1x8x32xf32, #tpu.memory_space<vmem>>, %arg4: memref<1x8x32xf32, #tpu.memory_space<vmem>>, %arg5: memref<1x8x32xf32, #tpu.memory_space<vmem>>, %arg6: memref<1x32x32xf32, #tpu.memory_space<vmem>>, %arg7: memref<1x32x32xf32, #tpu.memory_space<vmem>>, %arg8: memref<1x32x32xf32, #tpu.memory_space<vmem>>, %arg9: memref<1x32x32xf32, #tpu.memory_space<vmem>>, %arg10: memref<1x32xf32, #tpu.memory_space<vmem>>, %arg11: memref<1x8x32xf32, #tpu.memory_space<vmem>>, %arg12: memref<8x32xf32, #tpu.memory_space<vmem>>, %arg13: memref<1x8x32xf32, #tpu.memory_space<vmem>>, %arg14: memref<1x8x32xf32, #tpu.memory_space<vmem>>) attributes {dimension_semantics = [#tpu.dimension_semantics<parallel>, #tpu.dimension_semantics<arbitrary>, #tpu.dimension_semantics<arbitrary>], iteration_bounds = array<i64: 2, 1, 1>, scalar_prefetch = 0 : i64, scratch_operands = 3 : i64, tpu.core_type = #tpu.core_type<tc>, window_params = [{transform_indices = @transform_0, window_bounds = array<i64: 1, 8, 32>}, {transform_indices = @transform_1, window_bounds = array<i64: 1, 8, 32>}, {transform_indices = @transform_2, window_bounds = array<i64: 1, 8, 32>}, {transform_indices = @transform_3, window_bounds = array<i64: 1, 32, 32>}, {transform_indices = @transform_4, window_bounds = array<i64: 1, 32, 32>}, {transform_indices = @transform_5, window_bounds = array<i64: 1, 32, 32>}, {transform_indices = @transform_6, window_bounds = array<i64: 1, 32, 32>}, {pipeline_mode = #tpu.pipeline_mode<synchronous>, transform_indices = @transform_7, window_bounds = array<i64: 1, 32>}, {transform_indices = @transform_8, window_bounds = array<i64: 1, 8, 32>}]} {
    %c0_i32 = arith.constant 0 : i32
    %0 = arith.cmpi eq, %arg1, %c0_i32 : i32
    %1 = arith.extui %0 : i1 to i32
    %c0_i32_0 = arith.constant 0 : i32
    %2 = arith.cmpi ne, %1, %c0_i32_0 : i32
    scf.if %2 {
      %c0_38 = arith.constant 0 : index
      %c0_39 = arith.constant 0 : index
      %c0_40 = arith.constant 0 : index
      %87 = vector.load %arg4[%c0_38, %c0_39, %c0_40] : memref<1x8x32xf32, #tpu.memory_space<vmem>>, vector<1x8x32xf32>
      %88 = vector.shape_cast %87 : vector<1x8x32xf32> to vector<8x32xf32>
      %c0_41 = arith.constant 0 : index
      %c0_42 = arith.constant 0 : index
      %c0_43 = arith.constant 0 : index
      %89 = vector.load %arg5[%c0_41, %c0_42, %c0_43] : memref<1x8x32xf32, #tpu.memory_space<vmem>>, vector<1x8x32xf32>
      %90 = vector.shape_cast %89 : vector<1x8x32xf32> to vector<8x32xf32>
      %c0_44 = arith.constant 0 : index
      %c0_45 = arith.constant 0 : index
      %c0_46 = arith.constant 0 : index
      %91 = vector.load %arg7[%c0_44, %c0_45, %c0_46] : memref<1x32x32xf32, #tpu.memory_space<vmem>>, vector<1x32x32xf32>
      %92 = vector.shape_cast %91 : vector<1x32x32xf32> to vector<32x32xf32>
      %cst_47 = arith.constant dense<0.000000e+00> : vector<8x32xf32>
      %93 = tpu.matmul %88, %92, %cst_47 {dimension_numbers = #tpu.dot_dimension_numbers<[1], [0], [0], [1], [0, 0, 1, 1], [], []>} : vector<8x32xf32>, vector<32x32xf32>, vector<8x32xf32> -> vector<8x32xf32>
      %c0_48 = arith.constant 0 : index
      %c0_49 = arith.constant 0 : index
      %c0_50 = arith.constant 0 : index
      %94 = vector.load %arg8[%c0_48, %c0_49, %c0_50] : memref<1x32x32xf32, #tpu.memory_space<vmem>>, vector<1x32x32xf32>
      %95 = vector.shape_cast %94 : vector<1x32x32xf32> to vector<32x32xf32>
      %cst_51 = arith.constant dense<0.000000e+00> : vector<8x32xf32>
      %96 = tpu.matmul %90, %95, %cst_51 {dimension_numbers = #tpu.dot_dimension_numbers<[1], [0], [0], [1], [0, 0, 1, 1], [], []>} : vector<8x32xf32>, vector<32x32xf32>, vector<8x32xf32> -> vector<8x32xf32>
      %97 = vector.shape_cast %93 : vector<8x32xf32> to vector<1x8x32xf32>
      %98 = arith.index_cast %arg2 : i32 to index
      %c0_52 = arith.constant 0 : index
      %c0_53 = arith.constant 0 : index
      %99 = vector.load %arg13[%98, %c0_52, %c0_53] : memref<1x8x32xf32, #tpu.memory_space<vmem>>, vector<1x8x32xf32>
      tpu.vector_store %arg13[%98, %c0_52, %c0_53], %97 {strides = array<i32>} : memref<1x8x32xf32, #tpu.memory_space<vmem>>, vector<1x8x32xf32>,
      %100 = vector.shape_cast %96 : vector<8x32xf32> to vector<1x8x32xf32>
      %101 = arith.index_cast %arg2 : i32 to index
      %c0_54 = arith.constant 0 : index
      %c0_55 = arith.constant 0 : index
      %102 = vector.load %arg14[%101, %c0_54, %c0_55] : memref<1x8x32xf32, #tpu.memory_space<vmem>>, vector<1x8x32xf32>
      tpu.vector_store %arg14[%101, %c0_54, %c0_55], %100 {strides = array<i32>} : memref<1x8x32xf32, #tpu.memory_space<vmem>>, vector<1x8x32xf32>,
    } else {
    }
    %c0_i32_1 = arith.constant 0 : i32
    %3 = arith.cmpi eq, %arg2, %c0_i32_1 : i32
    %4 = arith.extui %3 : i1 to i32
    %c0_i32_2 = arith.constant 0 : i32
    %5 = arith.cmpi ne, %4, %c0_i32_2 : i32
    scf.if %5 {
      %cst_38 = arith.constant 0.000000e+00 : f32
      %87 = vector.broadcast %cst_38 : f32 to vector<8x32xf32>
      %c0_39 = arith.constant 0 : index
      %c0_40 = arith.constant 0 : index
      %88 = vector.load %arg12[%c0_39, %c0_40] : memref<8x32xf32, #tpu.memory_space<vmem>>, vector<8x32xf32>
      tpu.vector_store %arg12[%c0_39, %c0_40], %87 {strides = array<i32>} : memref<8x32xf32, #tpu.memory_space<vmem>>, vector<8x32xf32>,
    } else {
    }
    %c0 = arith.constant 0 : index
    %c0_3 = arith.constant 0 : index
    %c0_4 = arith.constant 0 : index
    %6 = vector.load %arg3[%c0, %c0_3, %c0_4] : memref<1x8x32xf32, #tpu.memory_space<vmem>>, vector<1x8x32xf32>
    %7 = vector.shape_cast %6 : vector<1x8x32xf32> to vector<8x32xf32>
    %c0_5 = arith.constant 0 : index
    %c0_6 = arith.constant 0 : index
    %c0_7 = arith.constant 0 : index
    %8 = vector.load %arg6[%c0_5, %c0_6, %c0_7] : memref<1x32x32xf32, #tpu.memory_space<vmem>>, vector<1x32x32xf32>
    %9 = vector.shape_cast %8 : vector<1x32x32xf32> to vector<32x32xf32>
    %cst = arith.constant dense<0.000000e+00> : vector<8x32xf32>
    %10 = tpu.matmul %7, %9, %cst {dimension_numbers = #tpu.dot_dimension_numbers<[1], [0], [0], [1], [0, 0, 1, 1], [], []>} : vector<8x32xf32>, vector<32x32xf32>, vector<8x32xf32> -> vector<8x32xf32>
    %11 = arith.index_cast %arg2 : i32 to index
    %c0_8 = arith.constant 0 : index
    %c0_9 = arith.constant 0 : index
    %12 = vector.load %arg13[%11, %c0_8, %c0_9] : memref<1x8x32xf32, #tpu.memory_space<vmem>>, vector<1x8x32xf32>
    %13 = vector.shape_cast %12 : vector<1x8x32xf32> to vector<8x32xf32>
    %14 = arith.index_cast %arg2 : i32 to index
    %c0_10 = arith.constant 0 : index
    %c0_11 = arith.constant 0 : index
    %15 = vector.load %arg14[%14, %c0_10, %c0_11] : memref<1x8x32xf32, #tpu.memory_space<vmem>>, vector<1x8x32xf32>
    %16 = vector.shape_cast %15 : vector<1x8x32xf32> to vector<8x32xf32>
    %17 = vector.extract_strided_slice %10 {offsets = [0, 0], sizes = [8, 8], strides = [1, 1]} : vector<8x32xf32> to vector<8x8xf32>
    %18 = vector.extract_strided_slice %13 {offsets = [0, 0], sizes = [8, 8], strides = [1, 1]} : vector<8x32xf32> to vector<8x8xf32>
    %19 = vector.extract_strided_slice %16 {offsets = [0, 0], sizes = [8, 8], strides = [1, 1]} : vector<8x32xf32> to vector<8x8xf32>
    %cst_12 = arith.constant dense<0.000000e+00> : vector<8x8xf32>
    %20 = tpu.matmul %17, %18, %cst_12 {dimension_numbers = #tpu.dot_dimension_numbers<[1], [1], [0], [0], [0, 0, 1, 0], [], []>} : vector<8x8xf32>, vector<8x8xf32>, vector<8x8xf32> -> vector<8x8xf32>
    %cst_13 = arith.constant dense<0xFF800000> : vector<8xf32>
    %21 = vector.multi_reduction <maximumf>, %20, %cst_13 [1] : vector<8x8xf32> to vector<8xf32>
    %22 = vector.shape_cast %21 : vector<8xf32> to vector<8x1xf32>
    %23 = vector.broadcast %22 : vector<8x1xf32> to vector<8x8xf32>
    %24 = arith.subf %20, %23 : vector<8x8xf32>
    %25 = math.exp %24 : vector<8x8xf32>
    %cst_14 = arith.constant dense<0.000000e+00> : vector<8xf32>
    %26 = vector.multi_reduction <add>, %25, %cst_14 [1] : vector<8x8xf32> to vector<8xf32>
    %27 = vector.shape_cast %26 : vector<8xf32> to vector<8x1xf32>
    %28 = tpu.reciprocal %27 : vector<8x1xf32> -> vector<8x1xf32>
    %29 = vector.broadcast %28 : vector<8x1xf32> to vector<8x8xf32>
    %30 = arith.mulf %25, %29 : vector<8x8xf32>
    %cst_15 = arith.constant dense<0.000000e+00> : vector<8x8xf32>
    %31 = tpu.matmul %30, %19, %cst_15 {dimension_numbers = #tpu.dot_dimension_numbers<[1], [0], [0], [1], [0, 0, 1, 1], [], []>} : vector<8x8xf32>, vector<8x8xf32>, vector<8x8xf32> -> vector<8x8xf32>
    %32 = vector.extract_strided_slice %10 {offsets = [0, 8], sizes = [8, 8], strides = [1, 1]} : vector<8x32xf32> to vector<8x8xf32>
    %33 = vector.extract_strided_slice %13 {offsets = [0, 8], sizes = [8, 8], strides = [1, 1]} : vector<8x32xf32> to vector<8x8xf32>
    %34 = vector.extract_strided_slice %16 {offsets = [0, 8], sizes = [8, 8], strides = [1, 1]} : vector<8x32xf32> to vector<8x8xf32>
    %cst_16 = arith.constant dense<0.000000e+00> : vector<8x8xf32>
    %35 = tpu.matmul %32, %33, %cst_16 {dimension_numbers = #tpu.dot_dimension_numbers<[1], [1], [0], [0], [0, 0, 1, 0], [], []>} : vector<8x8xf32>, vector<8x8xf32>, vector<8x8xf32> -> vector<8x8xf32>
    %cst_17 = arith.constant dense<0xFF800000> : vector<8xf32>
    %36 = vector.multi_reduction <maximumf>, %35, %cst_17 [1] : vector<8x8xf32> to vector<8xf32>
    %37 = vector.shape_cast %36 : vector<8xf32> to vector<8x1xf32>
    %38 = vector.broadcast %37 : vector<8x1xf32> to vector<8x8xf32>
    %39 = arith.subf %35, %38 : vector<8x8xf32>
    %40 = math.exp %39 : vector<8x8xf32>
    %cst_18 = arith.constant dense<0.000000e+00> : vector<8xf32>
    %41 = vector.multi_reduction <add>, %40, %cst_18 [1] : vector<8x8xf32> to vector<8xf32>
    %42 = vector.shape_cast %41 : vector<8xf32> to vector<8x1xf32>
    %43 = tpu.reciprocal %42 : vector<8x1xf32> -> vector<8x1xf32>
    %44 = vector.broadcast %43 : vector<8x1xf32> to vector<8x8xf32>
    %45 = arith.mulf %40, %44 : vector<8x8xf32>
    %cst_19 = arith.constant dense<0.000000e+00> : vector<8x8xf32>
    %46 = tpu.matmul %45, %34, %cst_19 {dimension_numbers = #tpu.dot_dimension_numbers<[1], [0], [0], [1], [0, 0, 1, 1], [], []>} : vector<8x8xf32>, vector<8x8xf32>, vector<8x8xf32> -> vector<8x8xf32>
    %47 = vector.extract_strided_slice %10 {offsets = [0, 16], sizes = [8, 8], strides = [1, 1]} : vector<8x32xf32> to vector<8x8xf32>
    %48 = vector.extract_strided_slice %13 {offsets = [0, 16], sizes = [8, 8], strides = [1, 1]} : vector<8x32xf32> to vector<8x8xf32>
    %49 = vector.extract_strided_slice %16 {offsets = [0, 16], sizes = [8, 8], strides = [1, 1]} : vector<8x32xf32> to vector<8x8xf32>
    %cst_20 = arith.constant dense<0.000000e+00> : vector<8x8xf32>
    %50 = tpu.matmul %47, %48, %cst_20 {dimension_numbers = #tpu.dot_dimension_numbers<[1], [1], [0], [0], [0, 0, 1, 0], [], []>} : vector<8x8xf32>, vector<8x8xf32>, vector<8x8xf32> -> vector<8x8xf32>
    %cst_21 = arith.constant dense<0xFF800000> : vector<8xf32>
    %51 = vector.multi_reduction <maximumf>, %50, %cst_21 [1] : vector<8x8xf32> to vector<8xf32>
    %52 = vector.shape_cast %51 : vector<8xf32> to vector<8x1xf32>
    %53 = vector.broadcast %52 : vector<8x1xf32> to vector<8x8xf32>
    %54 = arith.subf %50, %53 : vector<8x8xf32>
    %55 = math.exp %54 : vector<8x8xf32>
    %cst_22 = arith.constant dense<0.000000e+00> : vector<8xf32>
    %56 = vector.multi_reduction <add>, %55, %cst_22 [1] : vector<8x8xf32> to vector<8xf32>
    %57 = vector.shape_cast %56 : vector<8xf32> to vector<8x1xf32>
    %58 = tpu.reciprocal %57 : vector<8x1xf32> -> vector<8x1xf32>
    %59 = vector.broadcast %58 : vector<8x1xf32> to vector<8x8xf32>
    %60 = arith.mulf %55, %59 : vector<8x8xf32>
    %cst_23 = arith.constant dense<0.000000e+00> : vector<8x8xf32>
    %61 = tpu.matmul %60, %49, %cst_23 {dimension_numbers = #tpu.dot_dimension_numbers<[1], [0], [0], [1], [0, 0, 1, 1], [], []>} : vector<8x8xf32>, vector<8x8xf32>, vector<8x8xf32> -> vector<8x8xf32>
    %62 = vector.extract_strided_slice %10 {offsets = [0, 24], sizes = [8, 8], strides = [1, 1]} : vector<8x32xf32> to vector<8x8xf32>
    %63 = vector.extract_strided_slice %13 {offsets = [0, 24], sizes = [8, 8], strides = [1, 1]} : vector<8x32xf32> to vector<8x8xf32>
    %64 = vector.extract_strided_slice %16 {offsets = [0, 24], sizes = [8, 8], strides = [1, 1]} : vector<8x32xf32> to vector<8x8xf32>
    %cst_24 = arith.constant dense<0.000000e+00> : vector<8x8xf32>
    %65 = tpu.matmul %62, %63, %cst_24 {dimension_numbers = #tpu.dot_dimension_numbers<[1], [1], [0], [0], [0, 0, 1, 0], [], []>} : vector<8x8xf32>, vector<8x8xf32>, vector<8x8xf32> -> vector<8x8xf32>
    %cst_25 = arith.constant dense<0xFF800000> : vector<8xf32>
    %66 = vector.multi_reduction <maximumf>, %65, %cst_25 [1] : vector<8x8xf32> to vector<8xf32>
    %67 = vector.shape_cast %66 : vector<8xf32> to vector<8x1xf32>
    %68 = vector.broadcast %67 : vector<8x1xf32> to vector<8x8xf32>
    %69 = arith.subf %65, %68 : vector<8x8xf32>
    %70 = math.exp %69 : vector<8x8xf32>
    %cst_26 = arith.constant dense<0.000000e+00> : vector<8xf32>
    %71 = vector.multi_reduction <add>, %70, %cst_26 [1] : vector<8x8xf32> to vector<8xf32>
    %72 = vector.shape_cast %71 : vector<8xf32> to vector<8x1xf32>
    %73 = tpu.reciprocal %72 : vector<8x1xf32> -> vector<8x1xf32>
    %74 = vector.broadcast %73 : vector<8x1xf32> to vector<8x8xf32>
    %75 = arith.mulf %70, %74 : vector<8x8xf32>
    %cst_27 = arith.constant dense<0.000000e+00> : vector<8x8xf32>
    %76 = tpu.matmul %75, %64, %cst_27 {dimension_numbers = #tpu.dot_dimension_numbers<[1], [0], [0], [1], [0, 0, 1, 1], [], []>} : vector<8x8xf32>, vector<8x8xf32>, vector<8x8xf32> -> vector<8x8xf32>
    %77 = tpu.concatenate %31, %46, %61, %76 in 1 : vector<8x8xf32>, vector<8x8xf32>, vector<8x8xf32>, vector<8x8xf32> -> vector<8x32xf32>
    %c0_28 = arith.constant 0 : index
    %c0_29 = arith.constant 0 : index
    %78 = vector.load %arg12[%c0_28, %c0_29] : memref<8x32xf32, #tpu.memory_space<vmem>>, vector<8x32xf32>
    %c0_30 = arith.constant 0 : index
    %c0_31 = arith.constant 0 : index
    %c0_32 = arith.constant 0 : index
    %79 = vector.load %arg9[%c0_30, %c0_31, %c0_32] : memref<1x32x32xf32, #tpu.memory_space<vmem>>, vector<1x32x32xf32>
    %80 = vector.shape_cast %79 : vector<1x32x32xf32> to vector<32x32xf32>
    %cst_33 = arith.constant dense<0.000000e+00> : vector<8x32xf32>
    %81 = tpu.matmul %77, %80, %cst_33 {dimension_numbers = #tpu.dot_dimension_numbers<[1], [0], [0], [1], [0, 0, 1, 1], [], []>} : vector<8x32xf32>, vector<32x32xf32>, vector<8x32xf32> -> vector<8x32xf32>
    %82 = arith.addf %78, %81 : vector<8x32xf32>
    %c0_34 = arith.constant 0 : index
    %c0_35 = arith.constant 0 : index
    %83 = vector.load %arg12[%c0_34, %c0_35] : memref<8x32xf32, #tpu.memory_space<vmem>>, vector<8x32xf32>
    tpu.vector_store %arg12[%c0_34, %c0_35], %82 {strides = array<i32>} : memref<8x32xf32, #tpu.memory_space<vmem>>, vector<8x32xf32>,
    %c0_i32_36 = arith.constant 0 : i32
    %84 = arith.cmpi eq, %arg2, %c0_i32_36 : i32
    %85 = arith.extui %84 : i1 to i32
    %c0_i32_37 = arith.constant 0 : i32
    %86 = arith.cmpi ne, %85, %c0_i32_37 : i32
    scf.if %86 {
      %c0_38 = arith.constant 0 : index
      %c0_39 = arith.constant 0 : index
      %87 = vector.load %arg12[%c0_38, %c0_39] : memref<8x32xf32, #tpu.memory_space<vmem>>, vector<8x32xf32>
      %c0_40 = arith.constant 0 : index
      %c0_41 = arith.constant 0 : index
      %88 = vector.load %arg10[%c0_40, %c0_41] : memref<1x32xf32, #tpu.memory_space<vmem>>, vector<1x32xf32>
      %89 = vector.broadcast %88 : vector<1x32xf32> to vector<8x32xf32>
      %90 = arith.addf %87, %89 : vector<8x32xf32>
      %c0_42 = arith.constant 0 : index
      %c0_43 = arith.constant 0 : index
      %c0_44 = arith.constant 0 : index
      %91 = vector.load %arg11[%c0_42, %c0_43, %c0_44] : memref<1x8x32xf32, #tpu.memory_space<vmem>>, vector<1x8x32xf32>
      %92 = vector.shape_cast %91 : vector<1x8x32xf32> to vector<8x32xf32>
      %93 = vector.shape_cast %90 : vector<8x32xf32> to vector<1x8x32xf32>
      tpu.vector_store %arg11[%c0_42, %c0_43, %c0_44], %93 {strides = array<i32>} : memref<1x8x32xf32, #tpu.memory_space<vmem>>, vector<1x8x32xf32>,
    } else {
    }
    return
  }
  func.func @transform_0(%arg0: i32, %arg1: i32, %arg2: i32) -> (i32, i32, i32) {
    %c0_i32 = arith.constant 0 : i32
    %c0_i32_0 = arith.constant 0 : i32
    return %arg0, %arg1, %c0_i32 : i32, i32, i32
  }
  func.func @transform_1(%arg0: i32, %arg1: i32, %arg2: i32) -> (i32, i32, i32) {
    %c0_i32 = arith.constant 0 : i32
    %c0_i32_0 = arith.constant 0 : i32
    %c0_i32_1 = arith.constant 0 : i32
    return %arg0, %c0_i32, %c0_i32_0 : i32, i32, i32
  }
  func.func @transform_2(%arg0: i32, %arg1: i32, %arg2: i32) -> (i32, i32, i32) {
    %c0_i32 = arith.constant 0 : i32
    %c0_i32_0 = arith.constant 0 : i32
    %c0_i32_1 = arith.constant 0 : i32
    return %arg0, %c0_i32, %c0_i32_0 : i32, i32, i32
  }
  func.func @transform_3(%arg0: i32, %arg1: i32, %arg2: i32) -> (i32, i32, i32) {
    %c0_i32 = arith.constant 0 : i32
    %c0_i32_0 = arith.constant 0 : i32
    %c0_i32_1 = arith.constant 0 : i32
    return %arg2, %c0_i32, %c0_i32_0 : i32, i32, i32
  }
  func.func @transform_4(%arg0: i32, %arg1: i32, %arg2: i32) -> (i32, i32, i32) {
    %c0_i32 = arith.constant 0 : i32
    %c0_i32_0 = arith.constant 0 : i32
    %c0_i32_1 = arith.constant 0 : i32
    return %arg2, %c0_i32, %c0_i32_0 : i32, i32, i32
  }
  func.func @transform_5(%arg0: i32, %arg1: i32, %arg2: i32) -> (i32, i32, i32) {
    %c0_i32 = arith.constant 0 : i32
    %c0_i32_0 = arith.constant 0 : i32
    %c0_i32_1 = arith.constant 0 : i32
    return %arg2, %c0_i32, %c0_i32_0 : i32, i32, i32
  }
  func.func @transform_6(%arg0: i32, %arg1: i32, %arg2: i32) -> (i32, i32, i32) {
    %c0_i32 = arith.constant 0 : i32
    %c0_i32_0 = arith.constant 0 : i32
    %c0_i32_1 = arith.constant 0 : i32
    return %arg2, %c0_i32, %c0_i32_0 : i32, i32, i32
  }
  func.func @transform_7(%arg0: i32, %arg1: i32, %arg2: i32) -> (i32, i32) {
    %c0_i32 = arith.constant 0 : i32
    %c0_i32_0 = arith.constant 0 : i32
    %c0_i32_1 = arith.constant 0 : i32
    return %c0_i32, %c0_i32_0 : i32, i32
  }
  func.func @transform_8(%arg0: i32, %arg1: i32, %arg2: i32) -> (i32, i32, i32) {
    %c0_i32 = arith.constant 0 : i32
    %c0_i32_0 = arith.constant 0 : i32
    return %arg0, %arg1, %c0_i32 : i32, i32, i32
  }
}

</mosaic_0001>

<llo_original>
// kernel: tpu_custom_call.1
$region0: #{tpu_custom_call.1}
  #allocation0 [shape = 'u32[]', space=smem, size = 0x4, offset = 0x4, fixed_abs, tag = 'smem constant byte address 0x4 - core index']
  #allocation1 [shape = 'u32[72,128]{1,0:T(1,128)}', space=vmem, size = 0x9000, scoped, tag = 'internal scratch']
  #allocation2 [shape = 'f32[8,32]{1,0:T(8,128)}', space=vmem, size = 0x1000, scoped, tag = 'scratch operand']
  #allocation3 [shape = 'f32[1,8,32]{2,1,0:T(8,128)}', space=vmem, size = 0x1000, scoped, tag = 'scratch operand']
  #allocation4 [shape = 'f32[1,8,32]{2,1,0:T(8,128)}', space=vmem, size = 0x1000, scoped, tag = 'scratch operand']
  %s0 = inlined_call_operand.hbm [shape: f32[2,8,32], index: 0, kind: input, shape index: {}]
  %s1 = inlined_call_operand.hbm [shape: f32[2,8,32], index: 1, kind: input, shape index: {}]
  %s2 = inlined_call_operand.hbm [shape: f32[2,8,32], index: 2, kind: input, shape index: {}]
  %s3 = inlined_call_operand.hbm [shape: f32[1,32,32], index: 3, kind: input, shape index: {}]
  %s4 = inlined_call_operand.hbm [shape: f32[1,32,32], index: 4, kind: input, shape index: {}]
  %s5 = inlined_call_operand.hbm [shape: f32[1,32,32], index: 5, kind: input, shape index: {}]
  %s6 = inlined_call_operand.hbm [shape: f32[1,32,32], index: 6, kind: input, shape index: {}]
  %s7 = inlined_call_operand.vmem [shape: f32[1,32], index: 7, kind: input, shape index: {}]
  %s8 = inlined_call_operand.hbm [shape: f32[2,8,32], index: 8, kind: output, shape index: {}]
  %s9 = sld [smem:[#allocation0]]
  $region105: #{tpu_custom_call.1} parent=0
    _
  %s11 = ssub.s32 1, %s9
  %s12 = scalar_select 0, %s11, %s9
  $region1: #{tpu_custom_call.1} parent=0
    #allocation5 [shape = 'u8[8192]{0}', space=vmem, size = 0x2000, scoped, tag = 'input window, operand 0']
    #allocation6 [shape = 's32[2]{0}', space=sflag, size = 0x8, scoped, tag = 'scoped memory for tpu_custom_call.1']
    #allocation7 [shape = 's32[2]{0}', space=sflag, size = 0x8, scoped, tag = 'scoped memory for tpu_custom_call.1']
    #allocation8 [shape = 'u8[8192]{0}', space=vmem, size = 0x2000, scoped, tag = 'input window, operand 1']
    #allocation9 [shape = 's32[2]{0}', space=sflag, size = 0x8, scoped, tag = 'scoped memory for tpu_custom_call.1']
    #allocation10 [shape = 'u8[8192]{0}', space=vmem, size = 0x2000, scoped, tag = 'input window, operand 2']
    #allocation11 [shape = 'u8[16384]{0}', space=vmem, size = 0x4000, scoped, tag = 'input window, operand 3, single buffered']
    #allocation12 [shape = 's32[1]{0}', space=sflag, size = 0x4, scoped, tag = 'scoped memory for tpu_custom_call.1']
    #allocation13 [shape = 'u8[16384]{0}', space=vmem, size = 0x4000, scoped, tag = 'input window, operand 4, single buffered']
    #allocation14 [shape = 'u8[16384]{0}', space=vmem, size = 0x4000, scoped, tag = 'input window, operand 5, single buffered']
    #allocation15 [shape = 's32[1]{0}', space=sflag, size = 0x4, scoped, tag = 'scoped memory for tpu_custom_call.1']
    #allocation16 [shape = 'u8[16384]{0}', space=vmem, size = 0x4000, scoped, tag = 'input window, operand 6, single buffered']
    #allocation17 [shape = 'u8[8192]{0}', space=vmem, size = 0x2000, scoped, tag = 'output window, operand 0']
    %13 = vsyncpa [#allocation6], 0
    %s14 = scalar_lea.sflag [#allocation6], 1
    %15 = vsyncpa %s14, 0
    %16 = vsyncpa [#allocation9], 0
    %s17 = scalar_lea.sflag [#allocation9], 1
    %18 = vsyncpa %s17, 0
    %19 = vsyncpa [#allocation12], 0
    %20 = vsyncpa [#allocation15], 0
    %21 = vsyncpa [#allocation7], 0
    %s22 = scalar_lea.sflag [#allocation7], 1
    %23 = vsyncpa %s22, 0
    loop: start=0, step=1, limit=4
    $region2: #{tpu_custom_call.1} parent=1 // loop_pre_header
      _
    $region3: #{tpu_custom_call.1} parent=1 // loop_header
      %s25 = sphi 0, %s29
      %p26 = scmp.ge.s32.totalorder %s25, 4
      %s32 = sphi 0, %s51
      %s33 = sphi 0, %s47
      %s34 = sphi 0, %s43
      %s35 = sphi 0, %s32
      %s36 = sphi 0, %s33
      %s37 = sphi 0, %s34
      %s38 = sphi 0, %s35
      %s39 = sphi 0, %s36
      %s40 = sphi 0, %s37
      %s56 = sphi 0, %s58
      %s59 = sphi 0, %s56
      %s60 = sphi 0, %s59
      %s76 = sphi 0, %s60
      %s82 = sphi 0, %s84
      %s85 = sphi 0, %s82
      %s86 = sphi 0, %s85
      %s102 = sphi 0, %s86
      %s108 = sphi 0, %s110
      %s111 = sphi 0, %s108
      %s112 = sphi 0, %s111
      %s128 = sphi 0, %s112
      %s134 = sphi 0, %s136
      %s137 = sphi 0, %s134
      %s138 = sphi 0, %s137
      %s154 = sphi 0, %s138
      %s160 = sphi 0, %s162
      %s163 = sphi 0, %s160
      %s164 = sphi 0, %s163
      %s180 = sphi 0, %s164
      %s186 = sphi 0, %s188
      %s189 = sphi 0, %s186
      %s190 = sphi 0, %s189
      %s206 = sphi 0, %s190
      %s212 = sphi 0, %s214
      %s215 = sphi 0, %s212
      %s216 = sphi 0, %s215
      %s232 = sphi 0, %s216
      %s236 = sphi 0, %s236
      %s238 = sphi 0, %s236
      %s239 = sphi 0, %s238
      %s253 = sphi 0, %s239
      %s261 = sphi 0, %s263
      %s264 = sphi 0, %s261
      %s265 = sphi 0, %s264
      %s281 = sphi 0, %s265
    $region4: #{tpu_custom_call.1} parent=1 // loop_header_branch
      %28 = sbr.rel (%p26) target = $region8
    $region5: #{tpu_custom_call.1} parent=1 // loop_body
      %s30 = ssub.s32 %s25, 1
      %s31 = ssub.s32 %s25, 2
      %s41 = sadd.s32 1, %s34
      %p42 = scmp.ge.s32.totalorder %s41, 1
      %s43 = scalar_select %p42, 0, %s41
      %s44 = sadd.s32 1, %s33
      %s45 = scalar_select %p42, %s44, %s33
      %p46 = scmp.ge.s32.totalorder %s45, 1
      %s47 = scalar_select %p46, 0, %s45
      %s48 = sadd.s32 1, %s32
      %s49 = scalar_select %p46, %s48, %s32
      %p50 = scmp.ge.s32.totalorder %s49, 2
      %s51 = scalar_select %p50, 0, %s49
      %s52 = ssub.s32 %s32, %s51
      %s53 = ssub.s32 %s33, %s47
      %s54 = sor.u32 %s52, %s53
      %p55 = scmp.eq.s32.totalorder %s54, 0
      %s57 = sadd.s32 %s56, 1
      %s58 = scalar_select %p55, %s56, %s57
      %p61 = pneg %p55
      %p62 = scmp.eq.s32.totalorder %s25, 1
      %p63 = por %p61, %p62
      %p64 = scmp.ne.s32.totalorder %s56, %s59
      %p65 = scmp.eq.s32.totalorder %s25, 0
      %p66 = por %p64, %p65
      %p67 = scmp.ne.s32.totalorder %s56, %s59
      %p68 = scmp.eq.s32.totalorder %s30, 1
      %p69 = por %p67, %p68
      %p70 = scmp.ne.s32.totalorder %s59, %s60
      %p71 = scmp.eq.s32.totalorder %s30, 0
      %p72 = por %p70, %p71
      %p73 = scmp.ne.s32.totalorder %s59, %s60
      %p74 = scmp.eq.s32.totalorder %s31, 1
      %p75 = por %p73, %p74
      %p77 = scmp.ne.s32.totalorder %s60, %s76
      %p78 = scmp.eq.s32.totalorder %s31, 0
      %p79 = por %p77, %p78
      %s80 = ssub.s32 %s32, %s51
      %p81 = scmp.eq.s32.totalorder %s80, 0
      %s83 = sadd.s32 %s82, 1
      %s84 = scalar_select %p81, %s82, %s83
      %p87 = pneg %p81
      %p88 = scmp.eq.s32.totalorder %s25, 1
      %p89 = por %p87, %p88
      %p90 = scmp.ne.s32.totalorder %s82, %s85
      %p91 = scmp.eq.s32.totalorder %s25, 0
      %p92 = por %p90, %p91
      %p93 = scmp.ne.s32.totalorder %s82, %s85
      %p94 = scmp.eq.s32.totalorder %s30, 1
      %p95 = por %p93, %p94
      %p96 = scmp.ne.s32.totalorder %s85, %s86
      %p97 = scmp.eq.s32.totalorder %s30, 0
      %p98 = por %p96, %p97
      %p99 = scmp.ne.s32.totalorder %s85, %s86
      %p100 = scmp.eq.s32.totalorder %s31, 1
      %p101 = por %p99, %p100
      %p103 = scmp.ne.s32.totalorder %s86, %s102
      %p104 = scmp.eq.s32.totalorder %s31, 0
      %p105 = por %p103, %p104
      %s106 = ssub.s32 %s32, %s51
      %p107 = scmp.eq.s32.totalorder %s106, 0
      %s109 = sadd.s32 %s108, 1
      %s110 = scalar_select %p107, %s108, %s109
      %p113 = pneg %p107
      %p114 = scmp.eq.s32.totalorder %s25, 1
      %p115 = por %p113, %p114
      %p116 = scmp.ne.s32.totalorder %s108, %s111
      %p117 = scmp.eq.s32.totalorder %s25, 0
      %p118 = por %p116, %p117
      %p119 = scmp.ne.s32.totalorder %s108, %s111
      %p120 = scmp.eq.s32.totalorder %s30, 1
      %p121 = por %p119, %p120
      %p122 = scmp.ne.s32.totalorder %s111, %s112
      %p123 = scmp.eq.s32.totalorder %s30, 0
      %p124 = por %p122, %p123
      %p125 = scmp.ne.s32.totalorder %s111, %s112
      %p126 = scmp.eq.s32.totalorder %s31, 1
      %p127 = por %p125, %p126
      %p129 = scmp.ne.s32.totalorder %s112, %s128
      %p130 = scmp.eq.s32.totalorder %s31, 0
      %p131 = por %p129, %p130
      %s132 = ssub.s32 %s34, %s43
      %p133 = scmp.eq.s32.totalorder %s132, 0
      %s135 = sadd.s32 %s134, 1
      %s136 = scalar_select %p133, %s134, %s135
      %p139 = pneg %p133
      %p140 = scmp.eq.s32.totalorder %s25, 1
      %p141 = por %p139, %p140
      %p142 = scmp.ne.s32.totalorder %s134, %s137
      %p143 = scmp.eq.s32.totalorder %s25, 0
      %p144 = por %p142, %p143
      %p145 = scmp.ne.s32.totalorder %s134, %s137
      %p146 = scmp.eq.s32.totalorder %s30, 1
      %p147 = por %p145, %p146
      %p148 = scmp.ne.s32.totalorder %s137, %s138
      %p149 = scmp.eq.s32.totalorder %s30, 0
      %p150 = por %p148, %p149
      %p151 = scmp.ne.s32.totalorder %s137, %s138
      %p152 = scmp.eq.s32.totalorder %s31, 1
      %p153 = por %p151, %p152
      %p155 = scmp.ne.s32.totalorder %s138, %s154
      %p156 = scmp.eq.s32.totalorder %s31, 0
      %p157 = por %p155, %p156
      %s158 = ssub.s32 %s34, %s43
      %p159 = scmp.eq.s32.totalorder %s158, 0
      %s161 = sadd.s32 %s160, 1
      %s162 = scalar_select %p159, %s160, %s161
      %p165 = pneg %p159
      %p166 = scmp.eq.s32.totalorder %s25, 1
      %p167 = por %p165, %p166
      %p168 = scmp.ne.s32.totalorder %s160, %s163
      %p169 = scmp.eq.s32.totalorder %s25, 0
      %p170 = por %p168, %p169
      %p171 = scmp.ne.s32.totalorder %s160, %s163
      %p172 = scmp.eq.s32.totalorder %s30, 1
      %p173 = por %p171, %p172
      %p174 = scmp.ne.s32.totalorder %s163, %s164
      %p175 = scmp.eq.s32.totalorder %s30, 0
      %p176 = por %p174, %p175
      %p177 = scmp.ne.s32.totalorder %s163, %s164
      %p178 = scmp.eq.s32.totalorder %s31, 1
      %p179 = por %p177, %p178
      %p181 = scmp.ne.s32.totalorder %s164, %s180
      %p182 = scmp.eq.s32.totalorder %s31, 0
      %p183 = por %p181, %p182
      %s184 = ssub.s32 %s34, %s43
      %p185 = scmp.eq.s32.totalorder %s184, 0
      %s187 = sadd.s32 %s186, 1
      %s188 = scalar_select %p185, %s186, %s187
      %p191 = pneg %p185
      %p192 = scmp.eq.s32.totalorder %s25, 1
      %p193 = por %p191, %p192
      %p194 = scmp.ne.s32.totalorder %s186, %s189
      %p195 = scmp.eq.s32.totalorder %s25, 0
      %p196 = por %p194, %p195
      %p197 = scmp.ne.s32.totalorder %s186, %s189
      %p198 = scmp.eq.s32.totalorder %s30, 1
      %p199 = por %p197, %p198
      %p200 = scmp.ne.s32.totalorder %s189, %s190
      %p201 = scmp.eq.s32.totalorder %s30, 0
      %p202 = por %p200, %p201
      %p203 = scmp.ne.s32.totalorder %s189, %s190
      %p204 = scmp.eq.s32.totalorder %s31, 1
      %p205 = por %p203, %p204
      %p207 = scmp.ne.s32.totalorder %s190, %s206
      %p208 = scmp.eq.s32.totalorder %s31, 0
      %p209 = por %p207, %p208
      %s210 = ssub.s32 %s34, %s43
      %p211 = scmp.eq.s32.totalorder %s210, 0
      %s213 = sadd.s32 %s212, 1
      %s214 = scalar_select %p211, %s212, %s213
      %p217 = pneg %p211
      %p218 = scmp.eq.s32.totalorder %s25, 1
      %p219 = por %p217, %p218
      %p220 = scmp.ne.s32.totalorder %s212, %s215
      %p221 = scmp.eq.s32.totalorder %s25, 0
      %p222 = por %p220, %p221
      %p223 = scmp.ne.s32.totalorder %s212, %s215
      %p224 = scmp.eq.s32.totalorder %s30, 1
      %p225 = por %p223, %p224
      %p226 = scmp.ne.s32.totalorder %s215, %s216
      %p227 = scmp.eq.s32.totalorder %s30, 0
      %p228 = por %p226, %p227
      %p229 = scmp.ne.s32.totalorder %s215, %s216
      %p230 = scmp.eq.s32.totalorder %s31, 1
      %p231 = por %p229, %p230
      %p233 = scmp.ne.s32.totalorder %s216, %s232
      %p234 = scmp.eq.s32.totalorder %s31, 0
      %p235 = por %p233, %p234
      %s237 = sadd.s32 %s236, 1
      %p240 = scmp.eq.s32.totalorder %s25, 1
      %p241 = scmp.ne.s32.totalorder %s236, %s238
      %p242 = scmp.eq.s32.totalorder %s25, 0
      %p243 = por %p241, %p242
      %p244 = scmp.ne.s32.totalorder %s236, %s238
      %p245 = scmp.eq.s32.totalorder %s30, 1
      %p246 = por %p244, %p245
      %p247 = scmp.ne.s32.totalorder %s238, %s239
      %p248 = scmp.eq.s32.totalorder %s30, 0
      %p249 = por %p247, %p248
      %p250 = scmp.ne.s32.totalorder %s238, %s239
      %p251 = scmp.eq.s32.totalorder %s31, 1
      %p252 = por %p250, %p251
      %p254 = scmp.ne.s32.totalorder %s239, %s253
      %p255 = scmp.eq.s32.totalorder %s31, 0
      %p256 = por %p254, %p255
      %s257 = ssub.s32 %s32, %s51
      %s258 = ssub.s32 %s33, %s47
      %s259 = sor.u32 %s257, %s258
      %p260 = scmp.eq.s32.totalorder %s259, 0
      %s262 = sadd.s32 %s261, 1
      %s263 = scalar_select %p260, %s261, %s262
      %p266 = pneg %p260
      %p267 = scmp.eq.s32.totalorder %s25, 1
      %p268 = por %p266, %p267
      %p269 = scmp.ne.s32.totalorder %s261, %s264
      %p270 = scmp.eq.s32.totalorder %s25, 0
      %p271 = por %p269, %p270
      %p272 = scmp.ne.s32.totalorder %s261, %s264
      %p273 = scmp.eq.s32.totalorder %s30, 1
      %p274 = por %p272, %p273
      %p275 = scmp.ne.s32.totalorder %s264, %s265
      %p276 = scmp.eq.s32.totalorder %s30, 0
      %p277 = por %p275, %p276
      %p278 = scmp.ne.s32.totalorder %s264, %s265
      %p279 = scmp.eq.s32.totalorder %s31, 1
      %p280 = por %p278, %p279
      %p282 = scmp.ne.s32.totalorder %s265, %s281
      %p283 = scmp.eq.s32.totalorder %s31, 0
      %p284 = por %p282, %p283
      %p285 = scmp.le.s32.totalorder 1, %s25
      %p286 = scmp.lt.s32.totalorder %s25, 3
      %p287 = pnand %p285, %p286
      %p288 = pneg %p287
      // Predicated region
      $region9: #{tpu_custom_call.1} parent=5 // pred_check
        _
      $region10: #{tpu_custom_call.1} parent=5 // pred_check_branch
        %290 = sbr.rel (%p287) target = $region12
      $region11: #{tpu_custom_call.1} parent=5 // pred_region
        %s291 = ssub.s32 %s25, 1
        // Predicated region
        $region13: #{tpu_custom_call.1} parent=11 // pred_check
          %p292 = pneg %p150
        $region14: #{tpu_custom_call.1} parent=11 // pred_check_branch
          %294 = sbr.rel (%p292) target = $region16
        $region15: #{tpu_custom_call.1} parent=11 // pred_region
          %296 = vsyncadd [#allocation12], 0
          %s297 = smul.addr %s37, 4
          %s298 = smul.addr %s297, 8
          %s299 = scalar_lea.hbm %s3, %s298
          %s300 = sshll.u32 %s299, 4
          %s301 = int_to_ptr.hbm [resolvable:$true] %s300
          %s302 = sshll.u32 [#allocation11], 4
          %s303 = int_to_ptr.vmem [resolvable:$true] %s302
          %308 = dma.hbm_to_vmem [thread:$0]  %s301, 512, %s303, [#allocation12], 128, 128, 8
        $region16: #{tpu_custom_call.1} parent=11 // pred_fallthru
          _
        // Predicated region
        $region17: #{tpu_custom_call.1} parent=11 // pred_check
          %p309 = pneg %p176
        $region18: #{tpu_custom_call.1} parent=11 // pred_check_branch
          %311 = sbr.rel (%p309) target = $region20
        $region19: #{tpu_custom_call.1} parent=11 // pred_region
          %313 = vsyncadd [#allocation12], 0
          %s314 = smul.addr %s37, 4
          %s315 = smul.addr %s314, 8
          %s316 = scalar_lea.hbm %s4, %s315
          %s317 = sshll.u32 %s316, 4
          %s318 = int_to_ptr.hbm [resolvable:$true] %s317
          %s319 = sshll.u32 [#allocation13], 4
          %s320 = int_to_ptr.vmem [resolvable:$true] %s319
          %325 = dma.hbm_to_vmem [thread:$0]  %s318, 512, %s320, [#allocation12], 128, 128, 8
        $region20: #{tpu_custom_call.1} parent=11 // pred_fallthru
          _
        // Predicated region
        $region21: #{tpu_custom_call.1} parent=11 // pred_check
          %p326 = pneg %p202
        $region22: #{tpu_custom_call.1} parent=11 // pred_check_branch
          %328 = sbr.rel (%p326) target = $region24
        $region23: #{tpu_custom_call.1} parent=11 // pred_region
          %330 = vsyncadd [#allocation15], 0
          %s331 = smul.addr %s37, 4
          %s332 = smul.addr %s331, 8
          %s333 = scalar_lea.hbm %s5, %s332
          %s334 = sshll.u32 %s333, 4
          %s335 = int_to_ptr.hbm [resolvable:$true] %s334
          %s336 = sshll.u32 [#allocation14], 4
          %s337 = int_to_ptr.vmem [resolvable:$true] %s336
          %342 = dma.hbm_to_vmem [thread:$0]  %s335, 512, %s337, [#allocation15], 128, 128, 8
        $region24: #{tpu_custom_call.1} parent=11 // pred_fallthru
          _
        // Predicated region
        $region25: #{tpu_custom_call.1} parent=11 // pred_check
          %p343 = pneg %p228
        $region26: #{tpu_custom_call.1} parent=11 // pred_check_branch
          %345 = sbr.rel (%p343) target = $region28
        $region27: #{tpu_custom_call.1} parent=11 // pred_region
          %347 = vsyncadd [#allocation15], 0
          %s348 = smul.addr %s37, 4
          %s349 = smul.addr %s348, 8
          %s350 = scalar_lea.hbm %s6, %s349
          %s351 = sshll.u32 %s350, 4
          %s352 = int_to_ptr.hbm [resolvable:$true] %s351
          %s353 = sshll.u32 [#allocation16], 4
          %s354 = int_to_ptr.vmem [resolvable:$true] %s353
          %359 = dma.hbm_to_vmem [thread:$0]  %s352, 512, %s354, [#allocation15], 128, 128, 8
        $region28: #{tpu_custom_call.1} parent=11 // pred_fallthru
          _
        // Predicated region
        $region29: #{tpu_custom_call.1} parent=11 // pred_check
          %p360 = pneg %p249
        $region30: #{tpu_custom_call.1} parent=11 // pred_check_branch
          %362 = sbr.rel (%p360) target = $region32
        $region31: #{tpu_custom_call.1} parent=11 // pred_region
          _
        $region32: #{tpu_custom_call.1} parent=11 // pred_fallthru
          _
      $region12: #{tpu_custom_call.1} parent=5 // pred_fallthru
        _
      %p363 = scmp.lt.s32.totalorder %s25, 2
      // Predicated region
      $region33: #{tpu_custom_call.1} parent=5 // pred_check
        %p364 = pneg %p363
      $region34: #{tpu_custom_call.1} parent=5 // pred_check_branch
        %366 = sbr.rel (%p364) target = $region36
      $region35: #{tpu_custom_call.1} parent=5 // pred_region
        // Predicated region
        $region37: #{tpu_custom_call.1} parent=35 // pred_check
          %p367 = pneg %p66
        $region38: #{tpu_custom_call.1} parent=35 // pred_check_branch
          %369 = sbr.rel (%p367) target = $region40
        $region39: #{tpu_custom_call.1} parent=35 // pred_region
          %s370 = sand.u32 %s56, 1
          %s371 = scalar_lea.sflag [#allocation6], %s370
          %s372 = sand.u32 %s56, 1
          %s373 = smul.addr %s372, 8
          %s374 = scalar_lea.vmem [#allocation5], %s373
          %376 = vsyncadd %s371, 0
          %s377 = sadd.s32 %s33, %s32
          %s378 = smul.addr %s377, 8
          %s379 = scalar_lea.hbm %s0, %s378
          %s381 = sshll.u32 %s379, 4
          %s382 = int_to_ptr.hbm [resolvable:$true] %s381
          %s383 = sshll.u32 %s374, 4
          %s384 = int_to_ptr.vmem [resolvable:$true] %s383
          %386 = dma.hbm_to_vmem [thread:$0]  %s382, 128, %s384, %s371
        $region40: #{tpu_custom_call.1} parent=35 // pred_fallthru
          _
        // Predicated region
        $region41: #{tpu_custom_call.1} parent=35 // pred_check
          %p387 = pneg %p92
        $region42: #{tpu_custom_call.1} parent=35 // pred_check_branch
          %389 = sbr.rel (%p387) target = $region44
        $region43: #{tpu_custom_call.1} parent=35 // pred_region
          %s390 = sand.u32 %s25, 1
          %s391 = scalar_lea.sflag [#allocation9], %s390
          %s392 = sand.u32 %s82, 1
          %s393 = smul.addr %s392, 8
          %s394 = scalar_lea.vmem [#allocation8], %s393
          %396 = vsyncadd %s391, 0
          %s397 = smul.addr %s32, 8
          %s398 = scalar_lea.hbm %s1, %s397
          %s400 = sshll.u32 %s398, 4
          %s401 = int_to_ptr.hbm [resolvable:$true] %s400
          %s402 = sshll.u32 %s394, 4
          %s403 = int_to_ptr.vmem [resolvable:$true] %s402
          %405 = dma.hbm_to_vmem [thread:$0]  %s401, 128, %s403, %s391
        $region44: #{tpu_custom_call.1} parent=35 // pred_fallthru
          _
        // Predicated region
        $region45: #{tpu_custom_call.1} parent=35 // pred_check
          %p406 = pneg %p118
        $region46: #{tpu_custom_call.1} parent=35 // pred_check_branch
          %408 = sbr.rel (%p406) target = $region48
        $region47: #{tpu_custom_call.1} parent=35 // pred_region
          %s409 = sand.u32 %s25, 1
          %s410 = scalar_lea.sflag [#allocation9], %s409
          %s411 = sand.u32 %s108, 1
          %s412 = smul.addr %s411, 8
          %s413 = scalar_lea.vmem [#allocation10], %s412
          %415 = vsyncadd %s410, 0
          %s416 = smul.addr %s32, 8
          %s417 = scalar_lea.hbm %s2, %s416
          %s419 = sshll.u32 %s417, 4
          %s420 = int_to_ptr.hbm [resolvable:$true] %s419
          %s421 = sshll.u32 %s413, 4
          %s422 = int_to_ptr.vmem [resolvable:$true] %s421
          %424 = dma.hbm_to_vmem [thread:$0]  %s420, 128, %s422, %s410
        $region48: #{tpu_custom_call.1} parent=35 // pred_fallthru
          _
      $region36: #{tpu_custom_call.1} parent=5 // pred_fallthru
        _
      %p425 = scmp.le.s32.totalorder 1, %s25
      %p426 = scmp.lt.s32.totalorder %s25, 3
      %p427 = pnand %p425, %p426
      %p428 = pneg %p427
      // Predicated region
      $region49: #{tpu_custom_call.1} parent=5 // pred_check
        _
      $region50: #{tpu_custom_call.1} parent=5 // pred_check_branch
        %430 = sbr.rel (%p427) target = $region52
      $region51: #{tpu_custom_call.1} parent=5 // pred_region
        %s431 = ssub.s32 %s25, 1
        %s432 = sand.u32 %s59, 1
        %s433 = scalar_lea.sflag [#allocation6], %s432
        %s434 = sand.u32 %s59, 1
        %s435 = smul.addr %s434, 8
        %s436 = scalar_lea.vmem [#allocation5], %s435
        // Predicated region
        $region53: #{tpu_custom_call.1} parent=51 // pred_check
          %p437 = pneg %p72
        $region54: #{tpu_custom_call.1} parent=51 // pred_check_branch
          %439 = sbr.rel (%p437) target = $region56
        $region55: #{tpu_custom_call.1} parent=51 // pred_region
          %441 = dma.done %s433, 128
        $region56: #{tpu_custom_call.1} parent=51 // pred_fallthru
          _
        %s442 = sand.u32 %s30, 1
        %s443 = scalar_lea.sflag [#allocation9], %s442
        %s444 = sand.u32 %s85, 1
        %s445 = smul.addr %s444, 8
        %s446 = scalar_lea.vmem [#allocation8], %s445
        // Predicated region
        $region57: #{tpu_custom_call.1} parent=51 // pred_check
          %p447 = pneg %p98
        $region58: #{tpu_custom_call.1} parent=51 // pred_check_branch
          %449 = sbr.rel (%p447) target = $region60
        $region59: #{tpu_custom_call.1} parent=51 // pred_region
          %451 = dma.done %s443, 128
        $region60: #{tpu_custom_call.1} parent=51 // pred_fallthru
          _
        %s452 = sand.u32 %s30, 1
        %s453 = scalar_lea.sflag [#allocation9], %s452
        %s454 = sand.u32 %s111, 1
        %s455 = smul.addr %s454, 8
        %s456 = scalar_lea.vmem [#allocation10], %s455
        // Predicated region
        $region61: #{tpu_custom_call.1} parent=51 // pred_check
          %p457 = pneg %p124
        $region62: #{tpu_custom_call.1} parent=51 // pred_check_branch
          %459 = sbr.rel (%p457) target = $region64
        $region63: #{tpu_custom_call.1} parent=51 // pred_region
          %461 = dma.done %s453, 128
        $region64: #{tpu_custom_call.1} parent=51 // pred_fallthru
          _
        // Predicated region
        $region65: #{tpu_custom_call.1} parent=51 // pred_check
          %p462 = pneg %p150
        $region66: #{tpu_custom_call.1} parent=51 // pred_check_branch
          %464 = sbr.rel (%p462) target = $region68
        $region67: #{tpu_custom_call.1} parent=51 // pred_region
          %466 = dma.done [#allocation12], 512
        $region68: #{tpu_custom_call.1} parent=51 // pred_fallthru
          _
        // Predicated region
        $region69: #{tpu_custom_call.1} parent=51 // pred_check
          %p467 = pneg %p176
        $region70: #{tpu_custom_call.1} parent=51 // pred_check_branch
          %469 = sbr.rel (%p467) target = $region72
        $region71: #{tpu_custom_call.1} parent=51 // pred_region
          %471 = dma.done [#allocation12], 512
        $region72: #{tpu_custom_call.1} parent=51 // pred_fallthru
          _
        // Predicated region
        $region73: #{tpu_custom_call.1} parent=51 // pred_check
          %p472 = pneg %p202
        $region74: #{tpu_custom_call.1} parent=51 // pred_check_branch
          %474 = sbr.rel (%p472) target = $region76
        $region75: #{tpu_custom_call.1} parent=51 // pred_region
          %476 = dma.done [#allocation15], 512
        $region76: #{tpu_custom_call.1} parent=51 // pred_fallthru
          _
        // Predicated region
        $region77: #{tpu_custom_call.1} parent=51 // pred_check
          %p477 = pneg %p228
        $region78: #{tpu_custom_call.1} parent=51 // pred_check_branch
          %479 = sbr.rel (%p477) target = $region80
        $region79: #{tpu_custom_call.1} parent=51 // pred_region
          %481 = dma.done [#allocation15], 512
        $region80: #{tpu_custom_call.1} parent=51 // pred_fallthru
          _
        %s482 = sand.u32 %s59, 1
        %s483 = scalar_lea.sflag [#allocation6], %s482
        %s484 = sand.u32 %s59, 1
        %s485 = smul.addr %s484, 8
        %s486 = scalar_lea.vmem [#allocation5], %s485
        %p487 = pneg %p72
        %p488 = pneg %p69
        %s489 = sand.u32 %s30, 1
        %s490 = scalar_lea.sflag [#allocation9], %s489
        %s491 = sand.u32 %s85, 1
        %s492 = smul.addr %s491, 8
        %s493 = scalar_lea.vmem [#allocation8], %s492
        %p494 = pneg %p98
        %p495 = pneg %p95
        %s496 = sand.u32 %s30, 1
        %s497 = scalar_lea.sflag [#allocation9], %s496
        %s498 = sand.u32 %s111, 1
        %s499 = smul.addr %s498, 8
        %s500 = scalar_lea.vmem [#allocation10], %s499
        %p501 = pneg %p124
        %p502 = pneg %p121
        %p503 = pneg %p150
        %p504 = pneg %p147
        %p505 = pneg %p176
        %p506 = pneg %p173
        %p507 = pneg %p202
        %p508 = pneg %p199
        %p509 = pneg %p228
        %p510 = pneg %p225
        %p511 = pneg %p249
        %p512 = pneg %p246
        %p513 = pneg %p277
        %p514 = pneg %p274
        %s515 = sand.u32 %s264, 1
        %s516 = scalar_lea.sflag [#allocation7], %s515
        %s517 = sand.u32 %s264, 1
        %s518 = smul.addr %s517, 8
        %s519 = scalar_lea.vmem [#allocation17], %s518
        %p520 = scmp.eq.s32.totalorder %s36, 0
        // Predicated region
        $region81: #{tpu_custom_call.1} parent=51 // pred_check
          %p521 = pneg %p520
        $region82: #{tpu_custom_call.1} parent=51 // pred_check_branch
          %523 = sbr.rel (%p521) target = $region84
        $region83: #{tpu_custom_call.1} parent=51 // pred_region
          %v524 = vld [vmem:[%s446] sm:$0xff]
          %v525 = vld [vmem:[%s456] sm:$0xff]
          %v526 = vld [vmem:[#allocation13] sm:$0xff]
          %v527 = vld [vmem:[#allocation13 + $0x8] sm:$0xff]
          %v528 = vld [vmem:[#allocation13 + $0x10] sm:$0xff]
          %v529 = vld [vmem:[#allocation13 + $0x18] sm:$0xff]
          %vm530 = vcmask 261120
          %v532 = vsel %vm530, %v524, 0
          %534 = vmatpush.msra.mxu0 0.0
          %535 = vmatpush.msra.mxu0 0.0
          %536 = vmatpush.msra.mxu0 0.0
          %537 = vmatpush.msra.mxu0 0.0
          %538 = vmatpush.msra.mxu0 0.0
          %539 = vmatpush.msra.mxu0 0.0
          %540 = vmatpush.msra.mxu0 0.0
          %541 = vmatpush.msra.mxu0 0.0
          %542 = vmatpush.msra.mxu0 0.0
          %543 = vmatpush.msra.mxu0 0.0
          %544 = vmatpush.msra.mxu0 0.0
          %545 = vmatpush.msra.mxu0 0.0
          %546 = vmatpush.msra.mxu0 %v529
          %547 = vmatpush.msra.mxu0 %v528
          %548 = vmatpush.msra.mxu0 %v527
          %549 = vmatpush.msra.mxu0 %v526
          %550 = vmatmul.f32.gmra.mxu0 %v532
          %v551 = vpop.f32.mrf.mxu0
          %v552 = vadd.f32 0.0, %v551
          %553 = vdwg.mxu0
          %v554 = vld [vmem:[#allocation14] sm:$0xff]
          %v555 = vld [vmem:[#allocation14 + $0x8] sm:$0xff]
          %v556 = vld [vmem:[#allocation14 + $0x10] sm:$0xff]
          %v557 = vld [vmem:[#allocation14 + $0x18] sm:$0xff]
          %v559 = vsel %vm530, %v525, 0
          %561 = vmatpush.msra.mxu0 0.0
          %562 = vmatpush.msra.mxu0 0.0
          %563 = vmatpush.msra.mxu0 0.0
          %564 = vmatpush.msra.mxu0 0.0
          %565 = vmatpush.msra.mxu0 0.0
          %566 = vmatpush.msra.mxu0 0.0
          %567 = vmatpush.msra.mxu0 0.0
          %568 = vmatpush.msra.mxu0 0.0
          %569 = vmatpush.msra.mxu0 0.0
          %570 = vmatpush.msra.mxu0 0.0
          %571 = vmatpush.msra.mxu0 0.0
          %572 = vmatpush.msra.mxu0 0.0
          %573 = vmatpush.msra.mxu0 %v557
          %574 = vmatpush.msra.mxu0 %v556
          %575 = vmatpush.msra.mxu0 %v555
          %576 = vmatpush.msra.mxu0 %v554
          %577 = vmatmul.f32.gmra.mxu0 %v559
          %v578 = vpop.f32.mrf.mxu0
          %v579 = vadd.f32 0.0, %v578
          %580 = vdwg.mxu0
          %s581 = smul.u32 %s37, 8
          %s582 = scalar_lea.vmem [#allocation3], %s581
          %583 = vst.msk [vmem:[%s582] sm:$0xff] %vm530, %v552
          %s584 = scalar_lea.vmem [#allocation4], %s581
          %585 = vst.msk [vmem:[%s584] sm:$0xff] %vm530, %v579
        $region84: #{tpu_custom_call.1} parent=51 // pred_fallthru
          _
        %p586 = scmp.eq.s32.totalorder %s37, 0
        // Predicated region
        $region85: #{tpu_custom_call.1} parent=51 // pred_check
          %p587 = pneg %p586
        $region86: #{tpu_custom_call.1} parent=51 // pred_check_branch
          %589 = sbr.rel (%p587) target = $region88
        $region87: #{tpu_custom_call.1} parent=51 // pred_region
          %vm590 = vcmask 261120
          %591 = vst.msk [vmem:[#allocation2] sm:$0xff] %vm590, 0.0
        $region88: #{tpu_custom_call.1} parent=51 // pred_fallthru
          _
        %v592 = vld [vmem:[%s436] sm:$0xff]
        %v593 = vld [vmem:[#allocation11] sm:$0xff]
        %v594 = vld [vmem:[#allocation11 + $0x8] sm:$0xff]
        %v595 = vld [vmem:[#allocation11 + $0x10] sm:$0xff]
        %v596 = vld [vmem:[#allocation11 + $0x18] sm:$0xff]
        %vm597 = vcmask 261120
        %v599 = vsel %vm597, %v592, 0
        %601 = vmatpush.msra.mxu0 0.0
        %602 = vmatpush.msra.mxu0 0.0
        %603 = vmatpush.msra.mxu0 0.0
        %604 = vmatpush.msra.mxu0 0.0
        %605 = vmatpush.msra.mxu0 0.0
        %606 = vmatpush.msra.mxu0 0.0
        %607 = vmatpush.msra.mxu0 0.0
        %608 = vmatpush.msra.mxu0 0.0
        %609 = vmatpush.msra.mxu0 0.0
        %610 = vmatpush.msra.mxu0 0.0
        %611 = vmatpush.msra.mxu0 0.0
        %612 = vmatpush.msra.mxu0 0.0
        %613 = vmatpush.msra.mxu0 %v596
        %614 = vmatpush.msra.mxu0 %v595
        %615 = vmatpush.msra.mxu0 %v594
        %616 = vmatpush.msra.mxu0 %v593
        %617 = vmatmul.f32.gmra.mxu0 %v599
        %v618 = vpop.f32.mrf.mxu0
        %v619 = vadd.f32 0.0, %v618
        %620 = vdwg.mxu0
        %s621 = smul.u32 %s37, 8
        %s622 = scalar_lea.vmem [#allocation3], %s621
        %v623 = vld [vmem:[%s622] sm:$0xff]
        %s624 = scalar_lea.vmem [#allocation4], %s621
        %v625 = vld [vmem:[%s624] sm:$0xff]
        %vm626 = vcmask 64512
        %v628 = vsel %vm626, %v619, 0
        %v631 = vsel %vm626, %v623, 0
        %633 = vmatpush.xpose.msra.mxu0 0.0
        %634 = vmatpush.xpose.msra.mxu0 0.0
        %635 = vmatpush.xpose.msra.mxu0 0.0
        %636 = vmatpush.xpose.msra.mxu0 0.0
        %637 = vmatpush.xpose.msra.mxu0 0.0
        %638 = vmatpush.xpose.msra.mxu0 0.0
        %639 = vmatpush.xpose.msra.mxu0 0.0
        %640 = vmatpush.xpose.msra.mxu0 0.0
        %641 = vmatpush.xpose.msra.mxu0 0.0
        %642 = vmatpush.xpose.msra.mxu0 0.0
        %643 = vmatpush.xpose.msra.mxu0 0.0
        %644 = vmatpush.xpose.msra.mxu0 0.0
        %645 = vmatpush.xpose.msra.mxu0 0.0
        %646 = vmatpush.xpose.msra.mxu0 0.0
        %647 = vmatpush.xpose.msra.mxu0 0.0
        %648 = vmatpush.xpose.msra.mxu0 %v631
        %649 = vmatmul.f32.gmra.mxu0 %v628
        %v650 = vpop.f32.mrf.mxu0
        %v651 = vadd.f32 0.0, %v650
        %652 = vdwg.mxu0
        %v653 = vsel %vm626, %v651, -inf
        %654 = vmax.xlane.f32.xlu0 %v653
        %v655 = vpop.xlane.xlu0 %654
        %v656 = vsub.f32 %v651, %v655
        %v657 = vmul.f32 %v656, 1.442695
        %v658 = vpow.pop %v657
        %v659 = vsel %vm626, %v658, 0.0
        %660 = vadd.xlane.f32.xlu0 %v659
        %v661 = vpop.xlane.xlu0 %660
        %v662 = vrcp.pop %v661
        %v663 = vmul.f32 %v661, %v662
        %v664 = vsub.f32 1.0, %v663
        %v665 = vmul.f32 %v662, %v664
        %v666 = vadd.f32 %v662, %v665
        %vm667 = vweird.f32 %v661
        %vm668 = vweird.f32 %v662
        %vm669 = vmor %vm667, %vm668
        %v670 = vsel %vm669, %v662, %v666
        %v671 = vand.u32 2147483647, %v661
        %vm672 = vcmp.eq.f32.partialorder %v671, 8.507059e+37
        %v673 = vand.u32 %v661, 2147483648
        %v674 = vor.u32 1.1754944e-38, %v673
        %v675 = vsel %vm672, %v674, %v670
        %v676 = vmul.f32 %v658, %v675
        %v678 = vsel %vm626, %v676, 0
        %680 = vmatpush.msra.mxu0 0.0
        %681 = vmatpush.msra.mxu0 0.0
        %682 = vmatpush.msra.mxu0 0.0
        %683 = vmatpush.msra.mxu0 0.0
        %684 = vmatpush.msra.mxu0 0.0
        %685 = vmatpush.msra.mxu0 0.0
        %686 = vmatpush.msra.mxu0 0.0
        %687 = vmatpush.msra.mxu0 0.0
        %688 = vmatpush.msra.mxu0 0.0
        %689 = vmatpush.msra.mxu0 0.0
        %690 = vmatpush.msra.mxu0 0.0
        %691 = vmatpush.msra.mxu0 0.0
        %692 = vmatpush.msra.mxu0 0.0
        %693 = vmatpush.msra.mxu0 0.0
        %694 = vmatpush.msra.mxu0 0.0
        %695 = vmatpush.msra.mxu0 %v625
        %696 = vmatmul.f32.gmra.mxu0 %v678
        %v697 = vpop.f32.mrf.mxu0
        %v698 = vadd.f32 0.0, %v697
        %699 = vdwg.mxu0
        %700 = vrot.lane.b32.xlu0 %v619, 120
        %v701 = vpop.permute.xlu0 %700
        %702 = vrot.lane.b32.xlu0 %v623, 120
        %v703 = vpop.permute.xlu0 %702
        %v704 = vsel %vm626, %v701, 0
        %v706 = vsel %vm626, %v703, 0
        %708 = vmatpush.xpose.msra.mxu0 0.0
        %709 = vmatpush.xpose.msra.mxu0 0.0
        %710 = vmatpush.xpose.msra.mxu0 0.0
        %711 = vmatpush.xpose.msra.mxu0 0.0
        %712 = vmatpush.xpose.msra.mxu0 0.0
        %713 = vmatpush.xpose.msra.mxu0 0.0
        %714 = vmatpush.xpose.msra.mxu0 0.0
        %715 = vmatpush.xpose.msra.mxu0 0.0
        %716 = vmatpush.xpose.msra.mxu0 0.0
        %717 = vmatpush.xpose.msra.mxu0 0.0
        %718 = vmatpush.xpose.msra.mxu0 0.0
        %719 = vmatpush.xpose.msra.mxu0 0.0
        %720 = vmatpush.xpose.msra.mxu0 0.0
        %721 = vmatpush.xpose.msra.mxu0 0.0
        %722 = vmatpush.xpose.msra.mxu0 0.0
        %723 = vmatpush.xpose.msra.mxu0 %v706
        %724 = vmatmul.f32.gmra.mxu0 %v704
        %v725 = vpop.f32.mrf.mxu0
        %v726 = vadd.f32 0.0, %v725
        %727 = vdwg.mxu0
        %v728 = vsel %vm626, %v726, -inf
        %729 = vmax.xlane.f32.xlu0 %v728
        %v730 = vpop.xlane.xlu0 %729
        %v731 = vsub.f32 %v726, %v730
        %v732 = vmul.f32 %v731, 1.442695
        %v733 = vpow.pop %v732
        %v734 = vsel %vm626, %v733, 0.0
        %735 = vadd.xlane.f32.xlu0 %v734
        %v736 = vpop.xlane.xlu0 %735
        %v737 = vrcp.pop %v736
        %v738 = vmul.f32 %v736, %v737
        %v739 = vsub.f32 1.0, %v738
        %v740 = vmul.f32 %v737, %v739
        %v741 = vadd.f32 %v737, %v740
        %vm742 = vweird.f32 %v736
        %vm743 = vweird.f32 %v737
        %vm744 = vmor %vm742, %vm743
        %v745 = vsel %vm744, %v737, %v741
        %v746 = vand.u32 2147483647, %v736
        %vm747 = vcmp.eq.f32.partialorder %v746, 8.507059e+37
        %v748 = vand.u32 %v736, 2147483648
        %v749 = vor.u32 1.1754944e-38, %v748
        %v750 = vsel %vm747, %v749, %v745
        %v751 = vmul.f32 %v733, %v750
        %753 = vrot.lane.b32.xlu0 %v625, 120
        %v754 = vpop.permute.xlu0 %753
        %v757 = vsel %vm626, %v751, 0
        %759 = vmatpush.msra.mxu0 0.0
        %760 = vmatpush.msra.mxu0 0.0
        %761 = vmatpush.msra.mxu0 0.0
        %762 = vmatpush.msra.mxu0 0.0
        %763 = vmatpush.msra.mxu0 0.0
        %764 = vmatpush.msra.mxu0 0.0
        %765 = vmatpush.msra.mxu0 0.0
        %766 = vmatpush.msra.mxu0 0.0
        %767 = vmatpush.msra.mxu0 0.0
        %768 = vmatpush.msra.mxu0 0.0
        %769 = vmatpush.msra.mxu0 0.0
        %770 = vmatpush.msra.mxu0 0.0
        %771 = vmatpush.msra.mxu0 0.0
        %772 = vmatpush.msra.mxu0 0.0
        %773 = vmatpush.msra.mxu0 0.0
        %774 = vmatpush.msra.mxu0 %v754
        %775 = vmatmul.f32.gmra.mxu0 %v757
        %v776 = vpop.f32.mrf.mxu0
        %v777 = vadd.f32 0.0, %v776
        %778 = vdwg.mxu0
        %779 = vrot.lane.b32.xlu0 %v619, 112
        %v780 = vpop.permute.xlu0 %779
        %781 = vrot.lane.b32.xlu0 %v623, 112
        %v782 = vpop.permute.xlu0 %781
        %v783 = vsel %vm626, %v780, 0
        %v785 = vsel %vm626, %v782, 0
        %787 = vmatpush.xpose.msra.mxu0 0.0
        %788 = vmatpush.xpose.msra.mxu0 0.0
        %789 = vmatpush.xpose.msra.mxu0 0.0
        %790 = vmatpush.xpose.msra.mxu0 0.0
        %791 = vmatpush.xpose.msra.mxu0 0.0
        %792 = vmatpush.xpose.msra.mxu0 0.0
        %793 = vmatpush.xpose.msra.mxu0 0.0
        %794 = vmatpush.xpose.msra.mxu0 0.0
        %795 = vmatpush.xpose.msra.mxu0 0.0
        %796 = vmatpush.xpose.msra.mxu0 0.0
        %797 = vmatpush.xpose.msra.mxu0 0.0
        %798 = vmatpush.xpose.msra.mxu0 0.0
        %799 = vmatpush.xpose.msra.mxu0 0.0
        %800 = vmatpush.xpose.msra.mxu0 0.0
        %801 = vmatpush.xpose.msra.mxu0 0.0
        %802 = vmatpush.xpose.msra.mxu0 %v785
        %803 = vmatmul.f32.gmra.mxu0 %v783
        %v804 = vpop.f32.mrf.mxu0
        %v805 = vadd.f32 0.0, %v804
        %806 = vdwg.mxu0
        %v807 = vsel %vm626, %v805, -inf
        %808 = vmax.xlane.f32.xlu0 %v807
        %v809 = vpop.xlane.xlu0 %808
        %v810 = vsub.f32 %v805, %v809
        %v811 = vmul.f32 %v810, 1.442695
        %v812 = vpow.pop %v811
        %v813 = vsel %vm626, %v812, 0.0
        %814 = vadd.xlane.f32.xlu0 %v813
        %v815 = vpop.xlane.xlu0 %814
        %v816 = vrcp.pop %v815
        %v817 = vmul.f32 %v815, %v816
        %v818 = vsub.f32 1.0, %v817
        %v819 = vmul.f32 %v816, %v818
        %v820 = vadd.f32 %v816, %v819
        %vm821 = vweird.f32 %v815
        %vm822 = vweird.f32 %v816
        %vm823 = vmor %vm821, %vm822
        %v824 = vsel %vm823, %v816, %v820
        %v825 = vand.u32 2147483647, %v815
        %vm826 = vcmp.eq.f32.partialorder %v825, 8.507059e+37
        %v827 = vand.u32 %v815, 2147483648
        %v828 = vor.u32 1.1754944e-38, %v827
        %v829 = vsel %vm826, %v828, %v824
        %v830 = vmul.f32 %v812, %v829
        %831 = vrot.lane.b32.xlu0 %v625, 112
        %v832 = vpop.permute.xlu0 %831
        %v835 = vsel %vm626, %v830, 0
        %837 = vmatpush.msra.mxu0 0.0
        %838 = vmatpush.msra.mxu0 0.0
        %839 = vmatpush.msra.mxu0 0.0
        %840 = vmatpush.msra.mxu0 0.0
        %841 = vmatpush.msra.mxu0 0.0
        %842 = vmatpush.msra.mxu0 0.0
        %843 = vmatpush.msra.mxu0 0.0
        %844 = vmatpush.msra.mxu0 0.0
        %845 = vmatpush.msra.mxu0 0.0
        %846 = vmatpush.msra.mxu0 0.0
        %847 = vmatpush.msra.mxu0 0.0
        %848 = vmatpush.msra.mxu0 0.0
        %849 = vmatpush.msra.mxu0 0.0
        %850 = vmatpush.msra.mxu0 0.0
        %851 = vmatpush.msra.mxu0 0.0
        %852 = vmatpush.msra.mxu0 %v832
        %853 = vmatmul.f32.gmra.mxu0 %v835
        %v854 = vpop.f32.mrf.mxu0
        %v855 = vadd.f32 0.0, %v854
        %856 = vdwg.mxu0
        %857 = vrot.lane.b32.xlu0 %v619, 104
        %v858 = vpop.permute.xlu0 %857
        %859 = vrot.lane.b32.xlu0 %v623, 104
        %v860 = vpop.permute.xlu0 %859
        %v861 = vsel %vm626, %v858, 0
        %v863 = vsel %vm626, %v860, 0
        %865 = vmatpush.xpose.msra.mxu0 0.0
        %866 = vmatpush.xpose.msra.mxu0 0.0
        %867 = vmatpush.xpose.msra.mxu0 0.0
        %868 = vmatpush.xpose.msra.mxu0 0.0
        %869 = vmatpush.xpose.msra.mxu0 0.0
        %870 = vmatpush.xpose.msra.mxu0 0.0
        %871 = vmatpush.xpose.msra.mxu0 0.0
        %872 = vmatpush.xpose.msra.mxu0 0.0
        %873 = vmatpush.xpose.msra.mxu0 0.0
        %874 = vmatpush.xpose.msra.mxu0 0.0
        %875 = vmatpush.xpose.msra.mxu0 0.0
        %876 = vmatpush.xpose.msra.mxu0 0.0
        %877 = vmatpush.xpose.msra.mxu0 0.0
        %878 = vmatpush.xpose.msra.mxu0 0.0
        %879 = vmatpush.xpose.msra.mxu0 0.0
        %880 = vmatpush.xpose.msra.mxu0 %v863
        %881 = vmatmul.f32.gmra.mxu0 %v861
        %v882 = vpop.f32.mrf.mxu0
        %v883 = vadd.f32 0.0, %v882
        %884 = vdwg.mxu0
        %v885 = vsel %vm626, %v883, -inf
        %886 = vmax.xlane.f32.xlu0 %v885
        %v887 = vpop.xlane.xlu0 %886
        %v888 = vsub.f32 %v883, %v887
        %v889 = vmul.f32 %v888, 1.442695
        %v890 = vpow.pop %v889
        %v891 = vsel %vm626, %v890, 0.0
        %892 = vadd.xlane.f32.xlu0 %v891
        %v893 = vpop.xlane.xlu0 %892
        %v894 = vrcp.pop %v893
        %v895 = vmul.f32 %v893, %v894
        %v896 = vsub.f32 1.0, %v895
        %v897 = vmul.f32 %v894, %v896
        %v898 = vadd.f32 %v894, %v897
        %vm899 = vweird.f32 %v893
        %vm900 = vweird.f32 %v894
        %vm901 = vmor %vm899, %vm900
        %v902 = vsel %vm901, %v894, %v898
        %v903 = vand.u32 2147483647, %v893
        %vm904 = vcmp.eq.f32.partialorder %v903, 8.507059e+37
        %v905 = vand.u32 %v893, 2147483648
        %v906 = vor.u32 1.1754944e-38, %v905
        %v907 = vsel %vm904, %v906, %v902
        %v908 = vmul.f32 %v890, %v907
        %909 = vrot.lane.b32.xlu0 %v625, 104
        %v910 = vpop.permute.xlu0 %909
        %v913 = vsel %vm626, %v908, 0
        %915 = vmatpush.msra.mxu0 0.0
        %916 = vmatpush.msra.mxu0 0.0
        %917 = vmatpush.msra.mxu0 0.0
        %918 = vmatpush.msra.mxu0 0.0
        %919 = vmatpush.msra.mxu0 0.0
        %920 = vmatpush.msra.mxu0 0.0
        %921 = vmatpush.msra.mxu0 0.0
        %922 = vmatpush.msra.mxu0 0.0
        %923 = vmatpush.msra.mxu0 0.0
        %924 = vmatpush.msra.mxu0 0.0
        %925 = vmatpush.msra.mxu0 0.0
        %926 = vmatpush.msra.mxu0 0.0
        %927 = vmatpush.msra.mxu0 0.0
        %928 = vmatpush.msra.mxu0 0.0
        %929 = vmatpush.msra.mxu0 0.0
        %930 = vmatpush.msra.mxu0 %v910
        %931 = vmatmul.f32.gmra.mxu0 %v913
        %v932 = vpop.f32.mrf.mxu0
        %v933 = vadd.f32 0.0, %v932
        %934 = vdwg.mxu0
        %936 = vrot.lane.b32.xlu0 %v777, 8
        %v937 = vpop.permute.xlu0 %936
        %940 = vrot.lane.b32.xlu0 %v855, 16
        %v941 = vpop.permute.xlu0 %940
        %944 = vrot.lane.b32.xlu0 %v933, 24
        %v945 = vpop.permute.xlu0 %944
        %v947 = vsel %vm626, %v698, %v937
        %vm948 = vcmask 130048
        %v949 = vsel %vm948, %v947, %v941
        %vm950 = vcmask 195584
        %v951 = vsel %vm950, %v949, %v945
        %v952 = vld [vmem:[#allocation2] sm:$0xff]
        %v953 = vld [vmem:[#allocation16] sm:$0xff]
        %v954 = vld [vmem:[#allocation16 + $0x8] sm:$0xff]
        %v955 = vld [vmem:[#allocation16 + $0x10] sm:$0xff]
        %v956 = vld [vmem:[#allocation16 + $0x18] sm:$0xff]
        %v958 = vsel %vm597, %v951, 0
        %960 = vmatpush.msra.mxu0 0.0
        %961 = vmatpush.msra.mxu0 0.0
        %962 = vmatpush.msra.mxu0 0.0
        %963 = vmatpush.msra.mxu0 0.0
        %964 = vmatpush.msra.mxu0 0.0
        %965 = vmatpush.msra.mxu0 0.0
        %966 = vmatpush.msra.mxu0 0.0
        %967 = vmatpush.msra.mxu0 0.0
        %968 = vmatpush.msra.mxu0 0.0
        %969 = vmatpush.msra.mxu0 0.0
        %970 = vmatpush.msra.mxu0 0.0
        %971 = vmatpush.msra.mxu0 0.0
        %972 = vmatpush.msra.mxu0 %v956
        %973 = vmatpush.msra.mxu0 %v955
        %974 = vmatpush.msra.mxu0 %v954
        %975 = vmatpush.msra.mxu0 %v953
        %976 = vmatmul.f32.gmra.mxu0 %v958
        %v977 = vpop.f32.mrf.mxu0
        %v978 = vadd.f32 0.0, %v977
        %979 = vdwg.mxu0
        %v980 = vadd.f32 %v952, %v978
        %981 = vst.msk [vmem:[#allocation2] sm:$0xff] %vm597, %v980
        // Predicated region
        $region89: #{tpu_custom_call.1} parent=51 // pred_check
          %p982 = pneg %p586
        $region90: #{tpu_custom_call.1} parent=51 // pred_check_branch
          %984 = sbr.rel (%p982) target = $region92
        $region91: #{tpu_custom_call.1} parent=51 // pred_region
          %v985 = vld [vmem:[#allocation2] sm:$0xff]
          %v986 = vld [vmem:[%s7] sm:$0x1]
          %v988 = vperm.slane %v986, 0
          %v990 = vadd.f32 %v985, %v988
          %991 = vst.msk [vmem:[%s519] sm:$0xff] %vm597, %v990
        $region92: #{tpu_custom_call.1} parent=51 // pred_fallthru
          _
        %s992 = sand.u32 %s264, 1
        %s993 = scalar_lea.sflag [#allocation7], %s992
        %s994 = sand.u32 %s264, 1
        %s995 = smul.addr %s994, 8
        %s996 = scalar_lea.vmem [#allocation17], %s995
        // Predicated region
        $region93: #{tpu_custom_call.1} parent=51 // pred_check
          %p997 = pneg %p274
        $region94: #{tpu_custom_call.1} parent=51 // pred_check_branch
          %999 = sbr.rel (%p997) target = $region96
        $region95: #{tpu_custom_call.1} parent=51 // pred_region
          %1001 = vsyncadd %s993, 0
          %s1002 = sadd.s32 %s36, %s35
          %s1003 = smul.addr %s1002, 8
          %s1004 = scalar_lea.hbm %s8, %s1003
          %s1006 = sshll.u32 %s996, 4
          %s1007 = int_to_ptr.vmem [resolvable:$true] %s1006
          %s1008 = sshll.u32 %s1004, 4
          %s1009 = int_to_ptr.hbm [resolvable:$true] %s1008
          %1011 = dma.vmem_to_hbm [thread:$0]  %s1007, 128, %s1009, %s993
        $region96: #{tpu_custom_call.1} parent=51 // pred_fallthru
          _
      $region52: #{tpu_custom_call.1} parent=5 // pred_fallthru
        _
      %p1012 = scmp.le.s32.totalorder 2, %s25
      // Predicated region
      $region97: #{tpu_custom_call.1} parent=5 // pred_check
        %p1013 = pneg %p1012
      $region98: #{tpu_custom_call.1} parent=5 // pred_check_branch
        %1015 = sbr.rel (%p1013) target = $region100
      $region99: #{tpu_custom_call.1} parent=5 // pred_region
        %s1016 = ssub.s32 %s25, 2
        // Predicated region
        $region101: #{tpu_custom_call.1} parent=99 // pred_check
          %p1017 = pneg %p280
        $region102: #{tpu_custom_call.1} parent=99 // pred_check_branch
          %1019 = sbr.rel (%p1017) target = $region104
        $region103: #{tpu_custom_call.1} parent=99 // pred_region
          %s1020 = sand.u32 %s265, 1
          %s1021 = scalar_lea.sflag [#allocation7], %s1020
          %s1022 = sand.u32 %s265, 1
          %s1023 = smul.addr %s1022, 8
          %s1024 = scalar_lea.vmem [#allocation17], %s1023
          %1026 = dma.done %s1021, 128
        $region104: #{tpu_custom_call.1} parent=99 // pred_fallthru
          _
      $region100: #{tpu_custom_call.1} parent=5 // pred_fallthru
        _
    $region6: #{tpu_custom_call.1} parent=1 // loop_footer
      %s29 = sadd.s32 1, %s25
    $region7: #{tpu_custom_call.1} parent=1 // loop_footer_branch
      %24 = sbr.rel target = $region3
    $region8: #{tpu_custom_call.1} parent=1 // loop_exit
      _
    %1027 = vsyncpa [#allocation6], 1
    %s1028 = scalar_lea.sflag [#allocation6], 1
    %1029 = vsyncpa %s1028, 1
    %1030 = vsyncpa [#allocation9], 1
    %s1031 = scalar_lea.sflag [#allocation9], 1
    %1032 = vsyncpa %s1031, 1
    %1033 = vsyncpa [#allocation12], 1
    %1034 = vsyncpa [#allocation15], 1
    %1035 = vsyncpa [#allocation7], 1
    %s1036 = scalar_lea.sflag [#allocation7], 1
    %1037 = vsyncpa %s1036, 1

</llo_original>
